<compile_context>
chip_gen: v7x
topology: tpu7x:2x2x1
jax: 0.10.0
libtpu: 0.0.40
codegen_flags: <defaults>
</compile_context>

<pallas_src>
import jax
import jax.numpy as jnp
from jax import lax
from jax.experimental import pallas as pl
from jax.experimental.pallas import tpu as pltpu


def _round_up(v, m):
    return (v + m - 1) // m * m


# ---------------------------------------------------------------------------
# Fused Pallas kernel: all GCNConv layers + edge-logit epilogue
# ---------------------------------------------------------------------------

def _fused_gcn_kernel(src_ref, dst_ref,            # scalar-prefetch (SMEM) edge ids
                      a_ref, x_ref, w_ref, b_ref,  # inputs
                      out_ref,                     # SMEM logits (E,)
                      xw_scr, z_scr):              # VMEM scratch
    l = pl.program_id(0)             # layer index
    i = pl.program_id(1)             # A_hat row-tile index
    tm = a_ref.shape[0]

    # ---- XW for the current layer, computed once per layer (first row tile) ----
    @pl.when(jnp.logical_and(i == 0, l == 0))
    def _():
        xw_scr[...] = jnp.dot(
            x_ref[...], w_ref[0], preferred_element_type=jnp.float32
        ).astype(jnp.bfloat16)

    @pl.when(jnp.logical_and(i == 0, l > 0))
    def _():
        xw_scr[...] = jnp.dot(
            z_scr[...].astype(jnp.bfloat16), w_ref[0],
            preferred_element_type=jnp.float32,
        ).astype(jnp.bfloat16)

    # ---- aggregate this row tile: z[rows] = A_hat[rows, :] @ XW + b  (f32) ----
    row0 = pl.multiple_of(i * tm, tm)
    z_scr[pl.ds(row0, tm), :] = (
        jnp.dot(a_ref[...], xw_scr[...], preferred_element_type=jnp.float32)
        + b_ref[0]
    )

    # ---- edge-logit epilogue on the very last grid step ----
    last = jnp.logical_and(l == pl.num_programs(0) - 1,
                           i == pl.num_programs(1) - 1)

    @pl.when(last)
    def _():
        num_edges = out_ref.shape[0]

        # Per-edge dot: gather two z rows by dynamic sublane index (O(E*F) bytes,
        # zero MXU flops), VPU multiply, cross-lane reduce, scalar store to SMEM.
        # (For very large E this loop would be tiled/vectorized instead.)
        def body(e, carry):
            s = src_ref[e]
            d = dst_ref[e]
            zs = z_scr[pl.ds(s, 1), :]
            zd = z_scr[pl.ds(d, 1), :]
            out_ref[e] = jnp.sum(zs * zd)
            return carry

        lax.fori_loop(0, num_edges, body, 0)


def gcn_forward_pallas(a_hat, x, params, src_idx, dst_idx, *, tile_rows=128):
    """Fused GCN forward: logits[e] = <z_final[src_e], z_final[dst_e]>."""
    n = a_hat.shape[0]
    num_layers = len(params)
    num_edges = int(src_idx.shape[0])

    dims = [int(x.shape[1])] + [int(w.shape[1]) for w, _ in params]
    f_pad = _round_up(max(dims), 128)           # lane-dense feature slab
    n_pad = _round_up(n, 128)
    tm = min(tile_rows, n_pad)

    # ---- zero-padded, lane-dense operands (bf16 on the MXU path) ----
    a_p = jnp.zeros((n_pad, n_pad), jnp.bfloat16).at[:n, :n].set(
        a_hat.astype(jnp.bfloat16))
    x_p = jnp.zeros((n_pad, f_pad), jnp.bfloat16).at[:n, :x.shape[1]].set(
        x.astype(jnp.bfloat16))
    w_p = jnp.stack([
        jnp.zeros((f_pad, f_pad), jnp.bfloat16)
        .at[:w.shape[0], :w.shape[1]].set(w.astype(jnp.bfloat16))
        for w, _ in params])
    b_p = jnp.stack([
        jnp.zeros((1, f_pad), jnp.float32).at[0, :b.shape[0]].set(b)
        for _, b in params])

    grid = (num_layers, n_pad // tm)

    grid_spec = pltpu.PrefetchScalarGridSpec(
        num_scalar_prefetch=2,                  # src/dst edge ids land in SMEM
        grid=grid,
        in_specs=[
            # A_hat row tile.  When n_pad == tm the block index is constant, so the
            # whole adjacency is DMA'd exactly once and reused across all layers;
            # for large graphs it streams row-tile-wise per layer.
            pl.BlockSpec((tm, n_pad), lambda l, i, *_: (i, 0)),
            pl.BlockSpec((n_pad, f_pad), lambda l, i, *_: (0, 0)),        # x (resident)
            pl.BlockSpec((1, f_pad, f_pad), lambda l, i, *_: (l, 0, 0)),  # W_l
            pl.BlockSpec((1, 1, f_pad), lambda l, i, *_: (l, 0, 0)),      # b_l
        ],
        out_specs=pl.BlockSpec(memory_space=pltpu.MemorySpace.SMEM),
        scratch_shapes=[
            pltpu.VMEM((n_pad, f_pad), jnp.bfloat16),   # XW of the current layer
            pltpu.VMEM((n_pad, f_pad), jnp.float32),    # node embeddings z (resident)
        ],
    )

    # Explicit VMEM budget: streamed A tile (double-buffered) + resident x/W/b +
    # scratch, clamped well below the smallest (v7x) VMEM.
    vmem_limit = int(
        2 * tm * n_pad * 2            # A_hat tile, bf16, double-buffered
        + 2 * n_pad * f_pad * 2       # x, bf16
        + 2 * 2 * f_pad * f_pad * 2   # W_l block, bf16, double-buffered
        + 2 * 2 * f_pad * 4           # b_l block
        + n_pad * f_pad * 2           # XW scratch
        + n_pad * f_pad * 4           # z scratch
    ) + (4 << 20)
    vmem_limit = max(16 << 20, min(vmem_limit, 48 << 20))

    flops = int(2 * num_layers * (n_pad * f_pad * f_pad + n_pad * n_pad * f_pad)
                + 2 * num_edges * f_pad)
    bytes_accessed = int(num_layers * a_p.size * 2 + x_p.size * 2 + w_p.size * 2
                         + b_p.size * 4 + 3 * num_edges * 4)

    return pl.pallas_call(
        _fused_gcn_kernel,
        out_shape=jax.ShapeDtypeStruct((num_edges,), jnp.float32),
        grid_spec=grid_spec,
        compiler_params=pltpu.CompilerParams(
            # Both grid axes carry cross-iteration scratch state (z / XW), so they
            # stay sequential; the fusion removes the per-call launch + HBM z
            # round-trips that dominated the unfused version.
            dimension_semantics=("arbitrary", "arbitrary"),
            vmem_limit_bytes=vmem_limit,
        ),
        cost_estimate=pl.CostEstimate(
            flops=flops, transcendentals=0, bytes_accessed=bytes_accessed),
    )(src_idx, dst_idx, a_p, x_p, w_p, b_p)


# ---------------------------------------------------------------------------
# Plain-JAX glue: adjacency normalization, parameter init, forward pass
# ---------------------------------------------------------------------------

def build_norm_adj(edge_index, num_nodes):
    """Dense equivalent of PyG gcn_norm with add_self_loops=True (f32)."""
    src, dst = edge_index[0], edge_index[1]
    a = jnp.zeros((num_nodes, num_nodes), jnp.float32)
    a = a.at[dst, src].add(1.0)
    a = a + jnp.eye(num_nodes, dtype=jnp.float32)
    deg = jnp.sum(a, axis=1)
    dinv = jnp.where(deg > 0, 1.0 / jnp.sqrt(deg), 0.0)
    return dinv[:, None] * a * dinv[None, :]


def init_gcn_params(key, features, hidden_dimensions, classes):
    """GCNConv(channel, s) for each hidden dim, then GCNConv(channel, classes)."""
    dims = [features] + list(hidden_dimensions) + [classes]
    params = []
    for i in range(len(dims) - 1):
        key, sub = jax.random.split(key)
        fan_in, fan_out = dims[i], dims[i + 1]
        scale = jnp.sqrt(2.0 / (fan_in + fan_out)).astype(jnp.float32)
        w = scale * jax.random.normal(sub, (fan_in, fan_out), jnp.float32)
        b = jnp.zeros((fan_out,), jnp.float32)
        params.append((w, b))
    return params


def gcn_forward(params, x, pos_edge_index, neg_edge_index):
    num_nodes = x.shape[0]
    # reversed_pos_edge_index = pos_edge_index[[1, 0], :]; concat along edge axis
    reversed_pos = pos_edge_index[jnp.array([1, 0]), :]
    pos_edge_index_mut = jnp.concatenate([pos_edge_index, reversed_pos], axis=-1)
    a_hat = build_norm_adj(pos_edge_index_mut, num_nodes)

    selected = jnp.concatenate([pos_edge_index, neg_edge_index], axis=-1)
    src = selected[0].astype(jnp.int32)
    dst = selected[1].astype(jnp.int32)
    return gcn_forward_pallas(a_hat, x, params, src, dst)


# ---------------------------------------------------------------------------
# References for sanity checks
# ---------------------------------------------------------------------------

def gcn_forward_ref_f32(params, x, pos_edge_index, neg_edge_index):
    num_nodes = x.shape[0]
    reversed_pos = pos_edge_index[jnp.array([1, 0]), :]
    pos_mut = jnp.concatenate([pos_edge_index, reversed_pos], axis=-1)
    a_hat = build_norm_adj(pos_mut, num_nodes)
    z = x
    for w, b in params:
        z = a_hat @ (z @ w) + b[None, :]
    selected = jnp.concatenate([pos_edge_index, neg_edge_index], axis=-1)
    return jnp.sum(z[selected[0]] * z[selected[1]], axis=-1)


def gcn_forward_ref_bf16(params, x, pos_edge_index, neg_edge_index):
    """Mirrors the kernel arithmetic: bf16 MXU inputs, f32 accumulation/epilogue."""
    num_nodes = x.shape[0]
    reversed_pos = pos_edge_index[jnp.array([1, 0]), :]
    pos_mut = jnp.concatenate([pos_edge_index, reversed_pos], axis=-1)
    a_hat = build_norm_adj(pos_mut, num_nodes).astype(jnp.bfloat16)
    z = x.astype(jnp.float32)
    for w, b in params:
        xw = jnp.dot(z.astype(jnp.bfloat16), w.astype(jnp.bfloat16),
                     preferred_element_type=jnp.float32).astype(jnp.bfloat16)
        z = jnp.dot(a_hat, xw, preferred_element_type=jnp.float32) + b[None, :]
    selected = jnp.concatenate([pos_edge_index, neg_edge_index], axis=-1)
    return jnp.sum(z[selected[0]] * z[selected[1]], axis=-1)


if __name__ == "__main__":
    key = jax.random.PRNGKey(0)

    num_nodes = 16
    features = 8
    hidden_dimensions = [32, 16]
    classes = 4
    num_pos = 12
    num_neg = 12

    k_x, k_pos, k_neg, k_params = jax.random.split(key, 4)
    x = jax.random.normal(k_x, (num_nodes, features), jnp.float32)
    pos_edge_index = jax.random.randint(k_pos, (2, num_pos), 0, num_nodes, jnp.int32)
    neg_edge_index = jax.random.randint(k_neg, (2, num_neg), 0, num_nodes, jnp.int32)

    params = init_gcn_params(k_params, features, hidden_dimensions, classes)

    logits = gcn_forward(params, x, pos_edge_index, neg_edge_index)
    jax.block_until_ready(logits)
    assert logits.shape == (num_pos + num_neg,)

    # Tight check against a reference that mirrors the kernel's bf16/f32 arithmetic.
    ref_bf16 = gcn_forward_ref_bf16(params, x, pos_edge_index, neg_edge_index)
    assert jnp.allclose(logits, ref_bf16, atol=2e-3, rtol=2e-3), \
        float(jnp.max(jnp.abs(logits - ref_bf16)))

    # Looser semantic check against the pure-f32 reference (bf16 MXU inputs).
    ref_f32 = gcn_forward_ref_f32(params, x, pos_edge_index, neg_edge_index)
    assert jnp.allclose(logits, ref_f32, atol=1e-1, rtol=1e-1), \
        float(jnp.max(jnp.abs(logits - ref_f32)))

    print("KERNEL_OK")
</pallas_src>

<mosaic_0001>
module attributes {stable_mosaic.version = 11 : i64} {
  func.func @_fused_gcn_kernel(%arg0: i32, %arg1: i32, %arg2: memref<24xi32, #tpu.memory_space<smem>>, %arg3: memref<24xi32, #tpu.memory_space<smem>>, %arg4: memref<128x128xbf16, #tpu.memory_space<vmem>>, %arg5: memref<128x128xbf16, #tpu.memory_space<vmem>>, %arg6: memref<1x128x128xbf16, #tpu.memory_space<vmem>>, %arg7: memref<1x1x128xf32, #tpu.memory_space<vmem>>, %arg8: memref<24xf32, #tpu.memory_space<smem>>, %arg9: memref<128x128xbf16, #tpu.memory_space<vmem>>, %arg10: memref<128x128xf32, #tpu.memory_space<vmem>>) attributes {dimension_semantics = [#tpu.dimension_semantics<arbitrary>, #tpu.dimension_semantics<arbitrary>], iteration_bounds = array<i64: 3, 1>, scalar_prefetch = 2 : i64, scratch_operands = 2 : i64, tpu.core_type = #tpu.core_type<tc>, window_params = [{transform_indices = @transform_0, window_bounds = array<i64: 128, 128>}, {pipeline_mode = #tpu.pipeline_mode<synchronous>, transform_indices = @transform_1, window_bounds = array<i64: 128, 128>}, {transform_indices = @transform_2, window_bounds = array<i64: 1, 128, 128>}, {transform_indices = @transform_3, window_bounds = array<i64: 1, 1, 128>}, {transform_indices = @transform_4, window_bounds = array<i64: 24>}]} {
    %c0_i32 = arith.constant 0 : i32
    %0 = arith.cmpi eq, %arg1, %c0_i32 : i32
    %c0_i32_0 = arith.constant 0 : i32
    %1 = arith.cmpi eq, %arg0, %c0_i32_0 : i32
    %2 = arith.andi %0, %1 : i1
    %3 = arith.extui %2 : i1 to i32
    %c0_i32_1 = arith.constant 0 : i32
    %4 = arith.cmpi ne, %3, %c0_i32_1 : i32
    scf.if %4 {
      %c0_14 = arith.constant 0 : index
      %c0_15 = arith.constant 0 : index
      %26 = vector.load %arg5[%c0_14, %c0_15] : memref<128x128xbf16, #tpu.memory_space<vmem>>, vector<128x128xbf16>
      %c0_16 = arith.constant 0 : index
      %c0_17 = arith.constant 0 : index
      %c0_18 = arith.constant 0 : index
      %27 = vector.load %arg6[%c0_16, %c0_17, %c0_18] : memref<1x128x128xbf16, #tpu.memory_space<vmem>>, vector<1x128x128xbf16>
      %28 = vector.shape_cast %27 : vector<1x128x128xbf16> to vector<128x128xbf16>
      %cst_19 = arith.constant dense<0.000000e+00> : vector<128x128xf32>
      %29 = tpu.matmul %26, %28, %cst_19 {dimension_numbers = #tpu.dot_dimension_numbers<[1], [0], [0], [1], [0, 0, 1, 1], [], []>} : vector<128x128xbf16>, vector<128x128xbf16>, vector<128x128xf32> -> vector<128x128xf32>
      %30 = arith.truncf %29 : vector<128x128xf32> to vector<128x128xbf16>
      %c0_20 = arith.constant 0 : index
      %c0_21 = arith.constant 0 : index
      %31 = vector.load %arg9[%c0_20, %c0_21] : memref<128x128xbf16, #tpu.memory_space<vmem>>, vector<128x128xbf16>
      tpu.vector_store %arg9[%c0_20, %c0_21], %30 {strides = array<i32>} : memref<128x128xbf16, #tpu.memory_space<vmem>>, vector<128x128xbf16>,
    } else {
    }
    %c0_i32_2 = arith.constant 0 : i32
    %5 = arith.cmpi eq, %arg1, %c0_i32_2 : i32
    %c0_i32_3 = arith.constant 0 : i32
    %6 = arith.cmpi sgt, %arg0, %c0_i32_3 : i32
    %7 = arith.andi %5, %6 : i1
    %8 = arith.extui %7 : i1 to i32
    %c0_i32_4 = arith.constant 0 : i32
    %9 = arith.cmpi ne, %8, %c0_i32_4 : i32
    scf.if %9 {
      %c0_14 = arith.constant 0 : index
      %c0_15 = arith.constant 0 : index
      %26 = vector.load %arg10[%c0_14, %c0_15] : memref<128x128xf32, #tpu.memory_space<vmem>>, vector<128x128xf32>
      %27 = arith.truncf %26 : vector<128x128xf32> to vector<128x128xbf16>
      %c0_16 = arith.constant 0 : index
      %c0_17 = arith.constant 0 : index
      %c0_18 = arith.constant 0 : index
      %28 = vector.load %arg6[%c0_16, %c0_17, %c0_18] : memref<1x128x128xbf16, #tpu.memory_space<vmem>>, vector<1x128x128xbf16>
      %29 = vector.shape_cast %28 : vector<1x128x128xbf16> to vector<128x128xbf16>
      %cst_19 = arith.constant dense<0.000000e+00> : vector<128x128xf32>
      %30 = tpu.matmul %27, %29, %cst_19 {dimension_numbers = #tpu.dot_dimension_numbers<[1], [0], [0], [1], [0, 0, 1, 1], [], []>} : vector<128x128xbf16>, vector<128x128xbf16>, vector<128x128xf32> -> vector<128x128xf32>
      %31 = arith.truncf %30 : vector<128x128xf32> to vector<128x128xbf16>
      %c0_20 = arith.constant 0 : index
      %c0_21 = arith.constant 0 : index
      %32 = vector.load %arg9[%c0_20, %c0_21] : memref<128x128xbf16, #tpu.memory_space<vmem>>, vector<128x128xbf16>
      tpu.vector_store %arg9[%c0_20, %c0_21], %31 {strides = array<i32>} : memref<128x128xbf16, #tpu.memory_space<vmem>>, vector<128x128xbf16>,
    } else {
    }
    %c128_i32 = arith.constant 128 : i32
    %10 = arith.muli %arg1, %c128_i32 : i32
    %11 = tpu.assume_multiple %10, 128 : i32
    %c0 = arith.constant 0 : index
    %c0_5 = arith.constant 0 : index
    %12 = vector.load %arg4[%c0, %c0_5] : memref<128x128xbf16, #tpu.memory_space<vmem>>, vector<128x128xbf16>
    %c0_6 = arith.constant 0 : index
    %c0_7 = arith.constant 0 : index
    %13 = vector.load %arg9[%c0_6, %c0_7] : memref<128x128xbf16, #tpu.memory_space<vmem>>, vector<128x128xbf16>
    %cst = arith.constant dense<0.000000e+00> : vector<128x128xf32>
    %14 = tpu.matmul %12, %13, %cst {dimension_numbers = #tpu.dot_dimension_numbers<[1], [0], [0], [1], [0, 0, 1, 1], [], []>} : vector<128x128xbf16>, vector<128x128xbf16>, vector<128x128xf32> -> vector<128x128xf32>
    %c0_8 = arith.constant 0 : index
    %c0_9 = arith.constant 0 : index
    %c0_10 = arith.constant 0 : index
    %15 = vector.load %arg7[%c0_8, %c0_9, %c0_10] : memref<1x1x128xf32, #tpu.memory_space<vmem>>, vector<1x1x128xf32>
    %16 = vector.shape_cast %15 : vector<1x1x128xf32> to vector<1x128xf32>
    %17 = vector.broadcast %16 : vector<1x128xf32> to vector<128x128xf32>
    %18 = arith.addf %14, %17 : vector<128x128xf32>
    %19 = arith.index_cast %11 : i32 to index
    %c0_11 = arith.constant 0 : index
    %20 = vector.load %arg10[%19, %c0_11] : memref<128x128xf32, #tpu.memory_space<vmem>>, vector<128x128xf32>
    tpu.vector_store %arg10[%19, %c0_11], %18 {strides = array<i32>} : memref<128x128xf32, #tpu.memory_space<vmem>>, vector<128x128xf32>,
    %c2_i32 = arith.constant 2 : i32
    %21 = arith.cmpi eq, %arg0, %c2_i32 : i32
    %c0_i32_12 = arith.constant 0 : i32
    %22 = arith.cmpi eq, %arg1, %c0_i32_12 : i32
    %23 = arith.andi %21, %22 : i1
    %24 = arith.extui %23 : i1 to i32
    %c0_i32_13 = arith.constant 0 : i32
    %25 = arith.cmpi ne, %24, %c0_i32_13 : i32
    scf.if %25 {
      %c0_i32_14 = arith.constant 0 : i32
      %c24_i32 = arith.constant 24 : i32
      %26 = arith.addi %c0_i32_14, %c24_i32 : i32
      %c1_i32 = arith.constant 1 : i32
      scf.for %arg11 = %c0_i32_14 to %26 step %c1_i32  : i32 {
        %27 = arith.index_cast %arg11 : i32 to index
        %28 = memref.load %arg2[%27] : memref<24xi32, #tpu.memory_space<smem>>
        %29 = arith.index_cast %arg11 : i32 to index
        %30 = memref.load %arg3[%29] : memref<24xi32, #tpu.memory_space<smem>>
        %31 = arith.index_cast %28 : i32 to index
        %c0_16 = arith.constant 0 : index
        %32 = vector.load %arg10[%31, %c0_16] : memref<128x128xf32, #tpu.memory_space<vmem>>, vector<1x128xf32>
        %33 = arith.index_cast %30 : i32 to index
        %c0_17 = arith.constant 0 : index
        %34 = vector.load %arg10[%33, %c0_17] : memref<128x128xf32, #tpu.memory_space<vmem>>, vector<1x128xf32>
        %35 = arith.mulf %32, %34 : vector<1x128xf32>
        %36 = vector.shape_cast %35 : vector<1x128xf32> to vector<1x1x128xf32>
        %cst_18 = arith.constant dense<0.000000e+00> : vector<1xf32>
        %37 = vector.multi_reduction <add>, %36, %cst_18 [1, 2] : vector<1x1x128xf32> to vector<1xf32>
        %38 = vector.shape_cast %37 : vector<1xf32> to vector<1x1x1xf32>
        %39 = vector.extract %38[0, 0, 0] : f32 from vector<1x1x1xf32>
        %40 = arith.index_cast %arg11 : i32 to index
        %41 = memref.load %arg8[%40] : memref<24xf32, #tpu.memory_space<smem>>
        memref.store %39, %arg8[%40] : memref<24xf32, #tpu.memory_space<smem>>
      }
      %c24_i32_15 = arith.constant 24 : i32
    } else {
    }
    return
  }
  func.func @transform_0(%arg0: i32, %arg1: i32, %arg2: memref<24xi32, #tpu.memory_space<smem>>, %arg3: memref<24xi32, #tpu.memory_space<smem>>) -> (i32, i32) {
    %c0_i32 = arith.constant 0 : i32
    %c0_i32_0 = arith.constant 0 : i32
    return %arg1, %c0_i32 : i32, i32
  }
  func.func @transform_1(%arg0: i32, %arg1: i32, %arg2: memref<24xi32, #tpu.memory_space<smem>>, %arg3: memref<24xi32, #tpu.memory_space<smem>>) -> (i32, i32) {
    %c0_i32 = arith.constant 0 : i32
    %c0_i32_0 = arith.constant 0 : i32
    %c0_i32_1 = arith.constant 0 : i32
    return %c0_i32, %c0_i32_0 : i32, i32
  }
  func.func @transform_2(%arg0: i32, %arg1: i32, %arg2: memref<24xi32, #tpu.memory_space<smem>>, %arg3: memref<24xi32, #tpu.memory_space<smem>>) -> (i32, i32, i32) {
    %c0_i32 = arith.constant 0 : i32
    %c0_i32_0 = arith.constant 0 : i32
    %c0_i32_1 = arith.constant 0 : i32
    return %arg0, %c0_i32, %c0_i32_0 : i32, i32, i32
  }
  func.func @transform_3(%arg0: i32, %arg1: i32, %arg2: memref<24xi32, #tpu.memory_space<smem>>, %arg3: memref<24xi32, #tpu.memory_space<smem>>) -> (i32, i32, i32) {
    %c0_i32 = arith.constant 0 : i32
    %c0_i32_0 = arith.constant 0 : i32
    %c0_i32_1 = arith.constant 0 : i32
    return %arg0, %c0_i32, %c0_i32_0 : i32, i32, i32
  }
  func.func @transform_4(%arg0: i32, %arg1: i32, %arg2: memref<24xi32, #tpu.memory_space<smem>>, %arg3: memref<24xi32, #tpu.memory_space<smem>>) -> i32 {
    %c0_i32 = arith.constant 0 : i32
    %c0_i32_0 = arith.constant 0 : i32
    return %c0_i32 : i32
  }
}

</mosaic_0001>

<llo_original>
// kernel: tpu_custom_call.1
$region0: #{tpu_custom_call.1}
  #allocation0 [shape = 'u32[]', space=smem, size = 0x4, offset = 0x4, fixed_abs, tag = 'smem constant byte address 0x4 - core index']
  #allocation1 [shape = 'u32[144,128]{1,0:T(1,128)}', space=vmem, size = 0x12000, scoped, tag = 'internal scratch']
  #allocation2 [shape = 'bf16[128,128]{1,0:T(16,128)(2,1)}', space=vmem, size = 0x8000, scoped, tag = 'scratch operand']
  #allocation3 [shape = 'f32[128,128]{1,0:T(8,128)}', space=vmem, size = 0x10000, scoped, tag = 'scratch operand']
  #allocation4 [shape = 's32[1]{0}', space=sflag, size = 0x4, scoped, tag = 'scoped memory for tpu_custom_call.1']
  #allocation5 [shape = 'u8[512]{0}', space=smem, size = 0x200, scoped, tag = 'prefetched SMEM operand 0']
  #allocation6 [shape = 'u8[512]{0}', space=smem, size = 0x200, scoped, tag = 'prefetched SMEM operand 1']
  %s0 = inlined_call_operand.hbm [shape: s32[24], index: 0, kind: input, shape index: {}]
  %s1 = inlined_call_operand.vmem [shape: s32[24], index: 1, kind: input, shape index: {}]
  %s2 = inlined_call_operand.hbm [shape: bf16[128,128], index: 2, kind: input, shape index: {}]
  %s3 = inlined_call_operand.hbm [shape: bf16[128,128], index: 3, kind: input, shape index: {}]
  %s4 = inlined_call_operand.hbm [shape: bf16[3,128,128], index: 4, kind: input, shape index: {}]
  %s5 = inlined_call_operand.vmem [shape: f32[3,1,128], index: 5, kind: input, shape index: {}]
  %s6 = inlined_call_operand.hbm [shape: f32[24], index: 6, kind: output, shape index: {}]
  %s7 = sld [smem:[#allocation0]]
  $region80: #{tpu_custom_call.1} parent=0
    _
  %s9 = ssub.s32 1, %s7
  %s10 = scalar_select 0, %s9, %s7
  %12 = dma.hbm_to_smem %s0, 16, [#allocation5], [#allocation4]
  %s13 = sshll.u32 %s1, 4
  %s14 = int_to_ptr.vmem [resolvable:$true] %s13
  %16 = dma.vmem_to_smem %s14, 16, [#allocation6], [#allocation4]
  %17 = dma.done [#allocation4], 32
  %18 = sfence
  $region1: #{tpu_custom_call.1} parent=0
    #allocation7 [shape = 'u8[32768]{0}', space=vmem, size = 0x8000, scoped, tag = 'input window, operand 2, single buffered']
    #allocation8 [shape = 's32[2]{0}', space=sflag, size = 0x8, scoped, tag = 'scoped memory for tpu_custom_call.1']
    #allocation9 [shape = 's32[2]{0}', space=sflag, size = 0x8, scoped, tag = 'scoped memory for tpu_custom_call.1']
    #allocation10 [shape = 'u8[32768]{0}', space=vmem, size = 0x8000, scoped, tag = 'input window, operand 3, single buffered']
    #allocation11 [shape = 's32[1]{0}', space=sflag, size = 0x4, scoped, tag = 'scoped memory for tpu_custom_call.1']
    #allocation12 [shape = 'u8[65536]{0}', space=vmem, size = 0x10000, scoped, tag = 'input window, operand 4']
    #allocation13 [shape = 'u8[512]{0}', space=smem, size = 0x200, scoped, tag = 'output window, operand 0, single buffered']
    %19 = vsyncpa [#allocation8], 0
    %20 = vsyncpa [#allocation11], 0
    %21 = vsyncpa [#allocation9], 0
    loop: start=0, step=1, limit=5
    $region2: #{tpu_custom_call.1} parent=1 // loop_pre_header
      _
    $region3: #{tpu_custom_call.1} parent=1 // loop_header
      %s23 = sphi 0, %s27
      %p24 = scmp.ge.s32.totalorder %s23, 5
      %s30 = sphi 0, %s42
      %s31 = sphi 0, %s38
      %s32 = sphi 0, %s30
      %s33 = sphi 0, %s31
      %s34 = sphi 0, %s32
      %s35 = sphi 0, %s33
      %s45 = sphi 0, %s47
      %s48 = sphi 0, %s45
      %s49 = sphi 0, %s48
      %s65 = sphi 0, %s49
      %s69 = sphi 0, %s69
      %s71 = sphi 0, %s69
      %s72 = sphi 0, %s71
      %s86 = sphi 0, %s72
      %s92 = sphi 0, %s94
      %s95 = sphi 0, %s92
      %s96 = sphi 0, %s95
      %s112 = sphi 0, %s96
      %s118 = sphi 0, %s120
      %s121 = sphi 0, %s118
      %s122 = sphi 0, %s121
      %s138 = sphi 0, %s122
      %s142 = sphi 0, %s142
      %s144 = sphi 0, %s142
      %s145 = sphi 0, %s144
      %s159 = sphi 0, %s145
    $region4: #{tpu_custom_call.1} parent=1 // loop_header_branch
      %26 = sbr.rel (%p24) target = $region8
    $region5: #{tpu_custom_call.1} parent=1 // loop_body
      %s28 = ssub.s32 %s23, 1
      %s29 = ssub.s32 %s23, 2
      %s36 = sadd.s32 1, %s31
      %p37 = scmp.ge.s32.totalorder %s36, 1
      %s38 = scalar_select %p37, 0, %s36
      %s39 = sadd.s32 1, %s30
      %s40 = scalar_select %p37, %s39, %s30
      %p41 = scmp.ge.s32.totalorder %s40, 3
      %s42 = scalar_select %p41, 0, %s40
      %s43 = ssub.s32 %s31, %s38
      %p44 = scmp.eq.s32.totalorder %s43, 0
      %s46 = sadd.s32 %s45, 1
      %s47 = scalar_select %p44, %s45, %s46
      %p50 = pneg %p44
      %p51 = scmp.eq.s32.totalorder %s23, 2
      %p52 = por %p50, %p51
      %p53 = scmp.ne.s32.totalorder %s45, %s48
      %p54 = scmp.eq.s32.totalorder %s23, 0
      %p55 = por %p53, %p54
      %p56 = scmp.ne.s32.totalorder %s45, %s48
      %p57 = scmp.eq.s32.totalorder %s28, 2
      %p58 = por %p56, %p57
      %p59 = scmp.ne.s32.totalorder %s48, %s49
      %p60 = scmp.eq.s32.totalorder %s28, 0
      %p61 = por %p59, %p60
      %p62 = scmp.ne.s32.totalorder %s48, %s49
      %p63 = scmp.eq.s32.totalorder %s29, 2
      %p64 = por %p62, %p63
      %p66 = scmp.ne.s32.totalorder %s49, %s65
      %p67 = scmp.eq.s32.totalorder %s29, 0
      %p68 = por %p66, %p67
      %s70 = sadd.s32 %s69, 1
      %p73 = scmp.eq.s32.totalorder %s23, 2
      %p74 = scmp.ne.s32.totalorder %s69, %s71
      %p75 = scmp.eq.s32.totalorder %s23, 0
      %p76 = por %p74, %p75
      %p77 = scmp.ne.s32.totalorder %s69, %s71
      %p78 = scmp.eq.s32.totalorder %s28, 2
      %p79 = por %p77, %p78
      %p80 = scmp.ne.s32.totalorder %s71, %s72
      %p81 = scmp.eq.s32.totalorder %s28, 0
      %p82 = por %p80, %p81
      %p83 = scmp.ne.s32.totalorder %s71, %s72
      %p84 = scmp.eq.s32.totalorder %s29, 2
      %p85 = por %p83, %p84
      %p87 = scmp.ne.s32.totalorder %s72, %s86
      %p88 = scmp.eq.s32.totalorder %s29, 0
      %p89 = por %p87, %p88
      %s90 = ssub.s32 %s30, %s42
      %p91 = scmp.eq.s32.totalorder %s90, 0
      %s93 = sadd.s32 %s92, 1
      %s94 = scalar_select %p91, %s92, %s93
      %p97 = pneg %p91
      %p98 = scmp.eq.s32.totalorder %s23, 2
      %p99 = por %p97, %p98
      %p100 = scmp.ne.s32.totalorder %s92, %s95
      %p101 = scmp.eq.s32.totalorder %s23, 0
      %p102 = por %p100, %p101
      %p103 = scmp.ne.s32.totalorder %s92, %s95
      %p104 = scmp.eq.s32.totalorder %s28, 2
      %p105 = por %p103, %p104
      %p106 = scmp.ne.s32.totalorder %s95, %s96
      %p107 = scmp.eq.s32.totalorder %s28, 0
      %p108 = por %p106, %p107
      %p109 = scmp.ne.s32.totalorder %s95, %s96
      %p110 = scmp.eq.s32.totalorder %s29, 2
      %p111 = por %p109, %p110
      %p113 = scmp.ne.s32.totalorder %s96, %s112
      %p114 = scmp.eq.s32.totalorder %s29, 0
      %p115 = por %p113, %p114
      %s116 = ssub.s32 %s30, %s42
      %p117 = scmp.eq.s32.totalorder %s116, 0
      %s119 = sadd.s32 %s118, 1
      %s120 = scalar_select %p117, %s118, %s119
      %p123 = pneg %p117
      %p124 = scmp.eq.s32.totalorder %s23, 2
      %p125 = por %p123, %p124
      %p126 = scmp.ne.s32.totalorder %s118, %s121
      %p127 = scmp.eq.s32.totalorder %s23, 0
      %p128 = por %p126, %p127
      %p129 = scmp.ne.s32.totalorder %s118, %s121
      %p130 = scmp.eq.s32.totalorder %s28, 2
      %p131 = por %p129, %p130
      %p132 = scmp.ne.s32.totalorder %s121, %s122
      %p133 = scmp.eq.s32.totalorder %s28, 0
      %p134 = por %p132, %p133
      %p135 = scmp.ne.s32.totalorder %s121, %s122
      %p136 = scmp.eq.s32.totalorder %s29, 2
      %p137 = por %p135, %p136
      %p139 = scmp.ne.s32.totalorder %s122, %s138
      %p140 = scmp.eq.s32.totalorder %s29, 0
      %p141 = por %p139, %p140
      %s143 = sadd.s32 %s142, 1
      %p146 = scmp.eq.s32.totalorder %s23, 2
      %p147 = scmp.ne.s32.totalorder %s142, %s144
      %p148 = scmp.eq.s32.totalorder %s23, 0
      %p149 = por %p147, %p148
      %p150 = scmp.ne.s32.totalorder %s142, %s144
      %p151 = scmp.eq.s32.totalorder %s28, 2
      %p152 = por %p150, %p151
      %p153 = scmp.ne.s32.totalorder %s144, %s145
      %p154 = scmp.eq.s32.totalorder %s28, 0
      %p155 = por %p153, %p154
      %p156 = scmp.ne.s32.totalorder %s144, %s145
      %p157 = scmp.eq.s32.totalorder %s29, 2
      %p158 = por %p156, %p157
      %p160 = scmp.ne.s32.totalorder %s145, %s159
      %p161 = scmp.eq.s32.totalorder %s29, 0
      %p162 = por %p160, %p161
      %p163 = scmp.le.s32.totalorder 1, %s23
      %p164 = scmp.lt.s32.totalorder %s23, 4
      %p165 = pnand %p163, %p164
      %p166 = pneg %p165
      // Predicated region
      $region9: #{tpu_custom_call.1} parent=5 // pred_check
        _
      $region10: #{tpu_custom_call.1} parent=5 // pred_check_branch
        %168 = sbr.rel (%p165) target = $region12
      $region11: #{tpu_custom_call.1} parent=5 // pred_region
        %s169 = ssub.s32 %s23, 1
        // Predicated region
        $region13: #{tpu_custom_call.1} parent=11 // pred_check
          %p170 = pneg %p61
        $region14: #{tpu_custom_call.1} parent=11 // pred_check_branch
          %172 = sbr.rel (%p170) target = $region16
        $region15: #{tpu_custom_call.1} parent=11 // pred_region
          %s173 = smul.u32 16, %s33
          %s175 = ssub.s32 1024, 1024
          %176 = vsyncadd [#allocation8], %s175
          %s177 = smul.addr %s173, 64
          %s178 = scalar_lea.hbm %s2, %s177
          %s179 = sshll.u32 [#allocation7], 4
          %s180 = int_to_ptr.vmem [resolvable:$true] %s179
          %185 = dma.hbm_to_vmem [thread:$0]  %s178, 1024, %s180, [#allocation8], 64, 64, 4
        $region16: #{tpu_custom_call.1} parent=11 // pred_fallthru
          _
        // Predicated region
        $region17: #{tpu_custom_call.1} parent=11 // pred_check
          %p186 = pneg %p82
        $region18: #{tpu_custom_call.1} parent=11 // pred_check_branch
          %188 = sbr.rel (%p186) target = $region20
        $region19: #{tpu_custom_call.1} parent=11 // pred_region
          %s190 = ssub.s32 1024, 1024
          %191 = vsyncadd [#allocation11], %s190
          %s192 = sshll.u32 [#allocation10], 4
          %s193 = int_to_ptr.vmem [resolvable:$true] %s192
          %198 = dma.hbm_to_vmem [thread:$0]  %s3, 1024, %s193, [#allocation11], 64, 64, 4
        $region20: #{tpu_custom_call.1} parent=11 // pred_fallthru
          _
      $region12: #{tpu_custom_call.1} parent=5 // pred_fallthru
        _
      %p199 = scmp.lt.s32.totalorder %s23, 3
      // Predicated region
      $region21: #{tpu_custom_call.1} parent=5 // pred_check
        %p200 = pneg %p199
      $region22: #{tpu_custom_call.1} parent=5 // pred_check_branch
        %202 = sbr.rel (%p200) target = $region24
      $region23: #{tpu_custom_call.1} parent=5 // pred_region
        // Predicated region
        $region25: #{tpu_custom_call.1} parent=23 // pred_check
          %p203 = pneg %p102
        $region26: #{tpu_custom_call.1} parent=23 // pred_check_branch
          %205 = sbr.rel (%p203) target = $region28
        $region27: #{tpu_custom_call.1} parent=23 // pred_region
          %s206 = sand.u32 %s23, 1
          %s207 = scalar_lea.sflag [#allocation8], %s206
          %s208 = sand.u32 %s92, 1
          %s209 = smul.addr %s208, 64
          %s210 = scalar_lea.vmem [#allocation12], %s209
          %s212 = ssub.s32 1024, 1024
          %213 = vsyncadd %s207, %s212
          %s214 = smul.addr %s30, 16
          %s215 = smul.addr %s214, 64
          %s216 = scalar_lea.hbm %s4, %s215
          %s217 = sshll.u32 %s210, 4
          %s218 = int_to_ptr.vmem [resolvable:$true] %s217
          %223 = dma.hbm_to_vmem [thread:$0]  %s216, 1024, %s218, %s207, 64, 64, 4
        $region28: #{tpu_custom_call.1} parent=23 // pred_fallthru
          _
        // Predicated region
        $region29: #{tpu_custom_call.1} parent=23 // pred_check
          %p224 = pneg %p128
        $region30: #{tpu_custom_call.1} parent=23 // pred_check_branch
          %226 = sbr.rel (%p224) target = $region32
        $region31: #{tpu_custom_call.1} parent=23 // pred_region
          %p227 = scmp.lt.s32.totalorder %s30, 2
          %s228 = scalar_select %p227, %s30, 2
          %s229 = scalar_lea.vmem %s5, %s228
        $region32: #{tpu_custom_call.1} parent=23 // pred_fallthru
          _
      $region24: #{tpu_custom_call.1} parent=5 // pred_fallthru
        _
      %p230 = scmp.le.s32.totalorder 1, %s23
      %p231 = scmp.lt.s32.totalorder %s23, 4
      %p232 = pnand %p230, %p231
      %p233 = pneg %p232
      // Predicated region
      $region33: #{tpu_custom_call.1} parent=5 // pred_check
        _
      $region34: #{tpu_custom_call.1} parent=5 // pred_check_branch
        %235 = sbr.rel (%p232) target = $region36
      $region35: #{tpu_custom_call.1} parent=5 // pred_region
        %s236 = ssub.s32 %s23, 1
        // Predicated region
        $region37: #{tpu_custom_call.1} parent=35 // pred_check
          %p237 = pneg %p61
        $region38: #{tpu_custom_call.1} parent=35 // pred_check_branch
          %239 = sbr.rel (%p237) target = $region40
        $region39: #{tpu_custom_call.1} parent=35 // pred_region
          %240 = dma.done [#allocation8], 1024
        $region40: #{tpu_custom_call.1} parent=35 // pred_fallthru
          _
        // Predicated region
        $region41: #{tpu_custom_call.1} parent=35 // pred_check
          %p241 = pneg %p82
        $region42: #{tpu_custom_call.1} parent=35 // pred_check_branch
          %243 = sbr.rel (%p241) target = $region44
        $region43: #{tpu_custom_call.1} parent=35 // pred_region
          %244 = dma.done [#allocation11], 1024
        $region44: #{tpu_custom_call.1} parent=35 // pred_fallthru
          _
        %s245 = sand.u32 %s28, 1
        %s246 = scalar_lea.sflag [#allocation8], %s245
        %s247 = sand.u32 %s95, 1
        %s248 = smul.addr %s247, 64
        %s249 = scalar_lea.vmem [#allocation12], %s248
        // Predicated region
        $region45: #{tpu_custom_call.1} parent=35 // pred_check
          %p250 = pneg %p108
        $region46: #{tpu_custom_call.1} parent=35 // pred_check_branch
          %252 = sbr.rel (%p250) target = $region48
        $region47: #{tpu_custom_call.1} parent=35 // pred_region
          %253 = dma.done %s246, 1024
        $region48: #{tpu_custom_call.1} parent=35 // pred_fallthru
          _
        %p254 = pneg %p61
        %p255 = pneg %p58
        %p256 = pneg %p82
        %p257 = pneg %p79
        %s258 = sand.u32 %s28, 1
        %s259 = scalar_lea.sflag [#allocation8], %s258
        %s260 = sand.u32 %s95, 1
        %s261 = smul.addr %s260, 64
        %s262 = scalar_lea.vmem [#allocation12], %s261
        %p263 = pneg %p108
        %p264 = pneg %p105
        %p265 = scmp.lt.s32.totalorder %s32, 2
        %s266 = scalar_select %p265, %s32, 2
        %s267 = scalar_lea.vmem %s5, %s266
        %p268 = pneg %p134
        %p269 = pneg %p131
        %p270 = pneg %p155
        %p271 = pneg %p152
        %s272 = smul.u32 16, %s33
        %p273 = scmp.lt.s32.totalorder %s32, 2
        %s274 = scalar_select %p273, %s32, 2
        %s275 = scalar_lea.vmem %s5, %s274
        %p277 = scmp.eq.s32.totalorder %s33, 0
        %p278 = scmp.eq.s32.totalorder %s32, 0
        %p279 = pnand %p277, %p278
        %p280 = pneg %p279
        // Predicated region
        $region49: #{tpu_custom_call.1} parent=35 // pred_check
          _
        $region50: #{tpu_custom_call.1} parent=35 // pred_check_branch
          %282 = sbr.rel (%p279) target = $region52
        $region51: #{tpu_custom_call.1} parent=35 // pred_region
          %v283 = vld [vmem:[#allocation10] sm:$0xf]
          %v284 = vld [vmem:[#allocation10 + $0x4] sm:$0xf]
          %v285 = vld [vmem:[#allocation10 + $0x8] sm:$0xf]
          %v286 = vld [vmem:[#allocation10 + $0xc] sm:$0xf]
          %v287 = vld [vmem:[#allocation10 + $0x10] sm:$0xf]
          %v288 = vld [vmem:[#allocation10 + $0x14] sm:$0xf]
          %v289 = vld [vmem:[#allocation10 + $0x18] sm:$0xf]
          %v290 = vld [vmem:[#allocation10 + $0x1c] sm:$0xf]
          %v291 = vld [vmem:[#allocation10 + $0x20] sm:$0xf]
          %v292 = vld [vmem:[#allocation10 + $0x24] sm:$0xf]
          %v293 = vld [vmem:[#allocation10 + $0x28] sm:$0xf]
          %v294 = vld [vmem:[#allocation10 + $0x2c] sm:$0xf]
          %v295 = vld [vmem:[#allocation10 + $0x30] sm:$0xf]
          %v296 = vld [vmem:[#allocation10 + $0x34] sm:$0xf]
          %v297 = vld [vmem:[#allocation10 + $0x38] sm:$0xf]
          %v298 = vld [vmem:[#allocation10 + $0x3c] sm:$0xf]
          %v299 = vld [vmem:[%s249] sm:$0xf]
          %v300 = vld [vmem:[%s249 + $0x4] sm:$0xf]
          %v301 = vld [vmem:[%s249 + $0x8] sm:$0xf]
          %v302 = vld [vmem:[%s249 + $0xc] sm:$0xf]
          %v303 = vld [vmem:[%s249 + $0x10] sm:$0xf]
          %v304 = vld [vmem:[%s249 + $0x14] sm:$0xf]
          %v305 = vld [vmem:[%s249 + $0x18] sm:$0xf]
          %v306 = vld [vmem:[%s249 + $0x1c] sm:$0xf]
          %v307 = vld [vmem:[%s249 + $0x20] sm:$0xf]
          %v308 = vld [vmem:[%s249 + $0x24] sm:$0xf]
          %v309 = vld [vmem:[%s249 + $0x28] sm:$0xf]
          %v310 = vld [vmem:[%s249 + $0x2c] sm:$0xf]
          %v311 = vld [vmem:[%s249 + $0x30] sm:$0xf]
          %v312 = vld [vmem:[%s249 + $0x34] sm:$0xf]
          %v313 = vld [vmem:[%s249 + $0x38] sm:$0xf]
          %v314 = vld [vmem:[%s249 + $0x3c] sm:$0xf]
          %v331 = vunpack.c.l.b16 %v283
          %v332 = vunpack.c.l.b16 %v284
          %v333 = vunpack.c.l.b16 %v285
          %v334 = vunpack.c.l.b16 %v286
          %v335 = vunpack.c.l.b16 %v287
          %v336 = vunpack.c.l.b16 %v288
          %v337 = vunpack.c.l.b16 %v289
          %v338 = vunpack.c.l.b16 %v290
          %v339 = vunpack.c.l.b16 %v291
          %v340 = vunpack.c.l.b16 %v292
          %v341 = vunpack.c.l.b16 %v293
          %v342 = vunpack.c.l.b16 %v294
          %v343 = vunpack.c.l.b16 %v295
          %v344 = vunpack.c.l.b16 %v296
          %v345 = vunpack.c.l.b16 %v297
          %v346 = vunpack.c.l.b16 %v298
          %v347 = vpack.c.b16 %v332, %v331
          %v348 = vpack.c.b16 %v334, %v333
          %v349 = vpack.c.b16 %v336, %v335
          %v350 = vpack.c.b16 %v338, %v337
          %v351 = vpack.c.b16 %v340, %v339
          %v352 = vpack.c.b16 %v342, %v341
          %v353 = vpack.c.b16 %v344, %v343
          %v354 = vpack.c.b16 %v346, %v345
          %v379 = vunpack.c.l.b16 %v299
          %v380 = vunpack.c.l.b16 %v300
          %v381 = vunpack.c.l.b16 %v301
          %v382 = vunpack.c.l.b16 %v302
          %v383 = vunpack.c.l.b16 %v303
          %v384 = vunpack.c.l.b16 %v304
          %v385 = vunpack.c.l.b16 %v305
          %v386 = vunpack.c.l.b16 %v306
          %v387 = vunpack.c.l.b16 %v307
          %v388 = vunpack.c.l.b16 %v308
          %v389 = vunpack.c.l.b16 %v309
          %v390 = vunpack.c.l.b16 %v310
          %v391 = vunpack.c.l.b16 %v311
          %v392 = vunpack.c.l.b16 %v312
          %v393 = vunpack.c.l.b16 %v313
          %v394 = vunpack.c.l.b16 %v314
          %v395 = vpack.c.b16 %v380, %v379
          %v396 = vpack.c.b16 %v382, %v381
          %v397 = vpack.c.b16 %v384, %v383
          %v398 = vpack.c.b16 %v386, %v385
          %v399 = vpack.c.b16 %v388, %v387
          %v400 = vpack.c.b16 %v390, %v389
          %v401 = vpack.c.b16 %v392, %v391
          %v402 = vpack.c.b16 %v394, %v393
          %411 = vmatprep.subr.bf16.mxu0 0
          %412 = vmatpush1.bf16.msra.mxu0 %v395
          %413 = vmatprep.subr.bf16.mxu0 0
          %414 = vmatpush1.bf16.msra.mxu0 %v396
          %415 = vmatprep.subr.bf16.mxu0 0
          %416 = vmatpush1.bf16.msra.mxu0 %v397
          %417 = vmatprep.subr.bf16.mxu0 0
          %418 = vmatpush1.bf16.msra.mxu0 %v398
          %419 = vmatprep.subr.bf16.mxu0 0
          %420 = vmatpush1.bf16.msra.mxu0 %v399
          %421 = vmatprep.subr.bf16.mxu0 0
          %422 = vmatpush1.bf16.msra.mxu0 %v400
          %423 = vmatprep.subr.bf16.mxu0 0
          %424 = vmatpush1.bf16.msra.mxu0 %v401
          %425 = vmatprep.subr.bf16.mxu0 0
          %426 = vmatpush1.bf16.msra.mxu0 %v402
          %427 = vmatprep.subr.bf16.mxu0 0
          %428 = vmatpush1.bf16.msra.mxu0 0
          %429 = vmatprep.subr.bf16.mxu0 0
          %430 = vmatpush1.bf16.msra.mxu0 0
          %431 = vmatprep.subr.bf16.mxu0 0
          %432 = vmatpush1.bf16.msra.mxu0 0
          %433 = vmatprep.subr.bf16.mxu0 0
          %434 = vmatpush1.bf16.msra.mxu0 0
          %435 = vmatprep.subr.bf16.mxu0 0
          %436 = vmatpush1.bf16.msra.mxu0 0
          %437 = vmatprep.subr.bf16.mxu0 0
          %438 = vmatpush1.bf16.msra.mxu0 0
          %439 = vmatprep.subr.bf16.mxu0 0
          %440 = vmatpush1.bf16.msra.mxu0 0
          %441 = vmatprep.subr.bf16.mxu0 0
          %442 = vmatpush1.bf16.msra.mxu0 0
          %443 = vmatprep.mubr.bf16.mxu0 0
          %444 = vmatmul.mubr.bf16.gmra.mrb[0].mxu0 %v347
          %v445 = vpop.f32.mrb[0].mxu0
          %v446 = vadd.f32 0.0, %v445
          %v447 = vpop.f32.mrb[0].mxu0
          %v448 = vpop.f32.mrb[0].mxu0
          %v449 = vadd.f32 0.0, %v448
          %v450 = vpop.f32.mrb[0].mxu0
          %451 = vmatprep.mubr.bf16.mxu0 0
          %452 = vmatmul.mubr.bf16.gmra.mrb[0].mxu0 %v348
          %v453 = vpop.f32.mrb[0].mxu0
          %v454 = vadd.f32 0.0, %v453
          %v455 = vpop.f32.mrb[0].mxu0
          %v456 = vpop.f32.mrb[0].mxu0
          %v457 = vadd.f32 0.0, %v456
          %v458 = vpop.f32.mrb[0].mxu0
          %459 = vmatprep.mubr.bf16.mxu0 0
          %460 = vmatmul.mubr.bf16.gmra.mrb[0].mxu0 %v349
          %v461 = vpop.f32.mrb[0].mxu0
          %v462 = vadd.f32 0.0, %v461
          %v463 = vpop.f32.mrb[0].mxu0
          %v464 = vpop.f32.mrb[0].mxu0
          %v465 = vadd.f32 0.0, %v464
          %v466 = vpop.f32.mrb[0].mxu0
          %467 = vmatprep.mubr.bf16.mxu0 0
          %468 = vmatmul.mubr.bf16.gmra.mrb[0].mxu0 %v350
          %v469 = vpop.f32.mrb[0].mxu0
          %v470 = vadd.f32 0.0, %v469
          %v471 = vpop.f32.mrb[0].mxu0
          %v472 = vpop.f32.mrb[0].mxu0
          %v473 = vadd.f32 0.0, %v472
          %v474 = vpop.f32.mrb[0].mxu0
          %475 = vmatprep.mubr.bf16.mxu0 0
          %476 = vmatmul.mubr.bf16.gmra.mrb[0].mxu0 %v351
          %v477 = vpop.f32.mrb[0].mxu0
          %v478 = vadd.f32 0.0, %v477
          %v479 = vpop.f32.mrb[0].mxu0
          %v480 = vpop.f32.mrb[0].mxu0
          %v481 = vadd.f32 0.0, %v480
          %v482 = vpop.f32.mrb[0].mxu0
          %483 = vmatprep.mubr.bf16.mxu0 0
          %484 = vmatmul.mubr.bf16.gmra.mrb[0].mxu0 %v352
          %v485 = vpop.f32.mrb[0].mxu0
          %v486 = vadd.f32 0.0, %v485
          %v487 = vpop.f32.mrb[0].mxu0
          %v488 = vpop.f32.mrb[0].mxu0
          %v489 = vadd.f32 0.0, %v488
          %v490 = vpop.f32.mrb[0].mxu0
          %491 = vmatprep.mubr.bf16.mxu0 0
          %492 = vmatmul.mubr.bf16.gmra.mrb[0].mxu0 %v353
          %v493 = vpop.f32.mrb[0].mxu0
          %v494 = vadd.f32 0.0, %v493
          %v495 = vpop.f32.mrb[0].mxu0
          %v496 = vpop.f32.mrb[0].mxu0
          %v497 = vadd.f32 0.0, %v496
          %v498 = vpop.f32.mrb[0].mxu0
          %499 = vmatprep.mubr.bf16.mxu0 0
          %500 = vmatmul.mubr.bf16.gmra.mrb[0].mxu0 %v354
          %v501 = vpop.f32.mrb[0].mxu0
          %v502 = vadd.f32 0.0, %v501
          %v503 = vpop.f32.mrb[0].mxu0
          %v504 = vpop.f32.mrb[0].mxu0
          %v505 = vadd.f32 0.0, %v504
          %v506 = vpop.f32.mrb[0].mxu0
          %507 = vdwg.mxu0
          %v508 = vpack.c.bf16 %v449, %v446
          %v509 = vpack.c.bf16 %v457, %v454
          %v510 = vpack.c.bf16 %v465, %v462
          %v511 = vpack.c.bf16 %v473, %v470
          %v512 = vpack.c.bf16 %v481, %v478
          %v513 = vpack.c.bf16 %v489, %v486
          %v514 = vpack.c.bf16 %v497, %v494
          %v515 = vpack.c.bf16 %v505, %v502
          %516 = vst [vmem:[#allocation2] sm:$0xff] %v508
          %517 = vst [vmem:[#allocation2 + $0x8] sm:$0xff] %v509
          %518 = vst [vmem:[#allocation2 + $0x10] sm:$0xff] %v510
          %519 = vst [vmem:[#allocation2 + $0x18] sm:$0xff] %v511
          %520 = vst [vmem:[#allocation2 + $0x20] sm:$0xff] %v512
          %521 = vst [vmem:[#allocation2 + $0x28] sm:$0xff] %v513
          %522 = vst [vmem:[#allocation2 + $0x30] sm:$0xff] %v514
          %523 = vst [vmem:[#allocation2 + $0x38] sm:$0xff] %v515
        $region52: #{tpu_custom_call.1} parent=35 // pred_fallthru
          _
        %p524 = scmp.gt.s32.totalorder %s32, 0
        %p525 = pnand %p277, %p524
        %p526 = pneg %p525
        // Predicated region
        $region53: #{tpu_custom_call.1} parent=35 // pred_check
          _
        $region54: #{tpu_custom_call.1} parent=35 // pred_check_branch
          %528 = sbr.rel (%p525) target = $region56
        $region55: #{tpu_custom_call.1} parent=35 // pred_region
          %v529 = vld [vmem:[#allocation3] sm:$0xff]
          %v530 = vld [vmem:[#allocation3 + $0x8] sm:$0xff]
          %v531 = vld [vmem:[#allocation3 + $0x10] sm:$0xff]
          %v532 = vld [vmem:[#allocation3 + $0x18] sm:$0xff]
          %v533 = vld [vmem:[#allocation3 + $0x20] sm:$0xff]
          %v534 = vld [vmem:[#allocation3 + $0x28] sm:$0xff]
          %v535 = vld [vmem:[#allocation3 + $0x30] sm:$0xff]
          %v536 = vld [vmem:[#allocation3 + $0x38] sm:$0xff]
          %v537 = vld [vmem:[#allocation3 + $0x40] sm:$0xff]
          %v538 = vld [vmem:[#allocation3 + $0x48] sm:$0xff]
          %v539 = vld [vmem:[#allocation3 + $0x50] sm:$0xff]
          %v540 = vld [vmem:[#allocation3 + $0x58] sm:$0xff]
          %v541 = vld [vmem:[#allocation3 + $0x60] sm:$0xff]
          %v542 = vld [vmem:[#allocation3 + $0x68] sm:$0xff]
          %v543 = vld [vmem:[#allocation3 + $0x70] sm:$0xff]
          %v544 = vld [vmem:[#allocation3 + $0x78] sm:$0xff]
          %v545 = vpack.c.bf16 %v530, %v529
          %v546 = vpack.c.bf16 %v532, %v531
          %v547 = vpack.c.bf16 %v534, %v533
          %v548 = vpack.c.bf16 %v536, %v535
          %v549 = vpack.c.bf16 %v538, %v537
          %v550 = vpack.c.bf16 %v540, %v539
          %v551 = vpack.c.bf16 %v542, %v541
          %v552 = vpack.c.bf16 %v544, %v543
          %v553 = vld [vmem:[%s249] sm:$0xf]
          %v554 = vld [vmem:[%s249 + $0x4] sm:$0xf]
          %v555 = vld [vmem:[%s249 + $0x8] sm:$0xf]
          %v556 = vld [vmem:[%s249 + $0xc] sm:$0xf]
          %v557 = vld [vmem:[%s249 + $0x10] sm:$0xf]
          %v558 = vld [vmem:[%s249 + $0x14] sm:$0xf]
          %v559 = vld [vmem:[%s249 + $0x18] sm:$0xf]
          %v560 = vld [vmem:[%s249 + $0x1c] sm:$0xf]
          %v561 = vld [vmem:[%s249 + $0x20] sm:$0xf]
          %v562 = vld [vmem:[%s249 + $0x24] sm:$0xf]
          %v563 = vld [vmem:[%s249 + $0x28] sm:$0xf]
          %v564 = vld [vmem:[%s249 + $0x2c] sm:$0xf]
          %v565 = vld [vmem:[%s249 + $0x30] sm:$0xf]
          %v566 = vld [vmem:[%s249 + $0x34] sm:$0xf]
          %v567 = vld [vmem:[%s249 + $0x38] sm:$0xf]
          %v568 = vld [vmem:[%s249 + $0x3c] sm:$0xf]
          %v585 = vunpack.c.l.b16 %v553
          %v586 = vunpack.c.l.b16 %v554
          %v587 = vunpack.c.l.b16 %v555
          %v588 = vunpack.c.l.b16 %v556
          %v589 = vunpack.c.l.b16 %v557
          %v590 = vunpack.c.l.b16 %v558
          %v591 = vunpack.c.l.b16 %v559
          %v592 = vunpack.c.l.b16 %v560
          %v593 = vunpack.c.l.b16 %v561
          %v594 = vunpack.c.l.b16 %v562
          %v595 = vunpack.c.l.b16 %v563
          %v596 = vunpack.c.l.b16 %v564
          %v597 = vunpack.c.l.b16 %v565
          %v598 = vunpack.c.l.b16 %v566
          %v599 = vunpack.c.l.b16 %v567
          %v600 = vunpack.c.l.b16 %v568
          %v601 = vpack.c.b16 %v586, %v585
          %v602 = vpack.c.b16 %v588, %v587
          %v603 = vpack.c.b16 %v590, %v589
          %v604 = vpack.c.b16 %v592, %v591
          %v605 = vpack.c.b16 %v594, %v593
          %v606 = vpack.c.b16 %v596, %v595
          %v607 = vpack.c.b16 %v598, %v597
          %v608 = vpack.c.b16 %v600, %v599
          %617 = vmatprep.subr.bf16.mxu0 0
          %618 = vmatpush1.bf16.msra.mxu0 %v601
          %619 = vmatprep.subr.bf16.mxu0 0
          %620 = vmatpush1.bf16.msra.mxu0 %v602
          %621 = vmatprep.subr.bf16.mxu0 0
          %622 = vmatpush1.bf16.msra.mxu0 %v603
          %623 = vmatprep.subr.bf16.mxu0 0
          %624 = vmatpush1.bf16.msra.mxu0 %v604
          %625 = vmatprep.subr.bf16.mxu0 0
          %626 = vmatpush1.bf16.msra.mxu0 %v605
          %627 = vmatprep.subr.bf16.mxu0 0
          %628 = vmatpush1.bf16.msra.mxu0 %v606
          %629 = vmatprep.subr.bf16.mxu0 0
          %630 = vmatpush1.bf16.msra.mxu0 %v607
          %631 = vmatprep.subr.bf16.mxu0 0
          %632 = vmatpush1.bf16.msra.mxu0 %v608
          %633 = vmatprep.subr.bf16.mxu0 0
          %634 = vmatpush1.bf16.msra.mxu0 0
          %635 = vmatprep.subr.bf16.mxu0 0
          %636 = vmatpush1.bf16.msra.mxu0 0
          %637 = vmatprep.subr.bf16.mxu0 0
          %638 = vmatpush1.bf16.msra.mxu0 0
          %639 = vmatprep.subr.bf16.mxu0 0
          %640 = vmatpush1.bf16.msra.mxu0 0
          %641 = vmatprep.subr.bf16.mxu0 0
          %642 = vmatpush1.bf16.msra.mxu0 0
          %643 = vmatprep.subr.bf16.mxu0 0
          %644 = vmatpush1.bf16.msra.mxu0 0
          %645 = vmatprep.subr.bf16.mxu0 0
          %646 = vmatpush1.bf16.msra.mxu0 0
          %647 = vmatprep.subr.bf16.mxu0 0
          %648 = vmatpush1.bf16.msra.mxu0 0
          %649 = vmatprep.mubr.bf16.mxu0 0
          %650 = vmatmul.mubr.bf16.gmra.mrb[0].mxu0 %v545
          %v651 = vpop.f32.mrb[0].mxu0
          %v652 = vadd.f32 0.0, %v651
          %v653 = vpop.f32.mrb[0].mxu0
          %v654 = vpop.f32.mrb[0].mxu0
          %v655 = vadd.f32 0.0, %v654
          %v656 = vpop.f32.mrb[0].mxu0
          %657 = vmatprep.mubr.bf16.mxu0 0
          %658 = vmatmul.mubr.bf16.gmra.mrb[0].mxu0 %v546
          %v659 = vpop.f32.mrb[0].mxu0
          %v660 = vadd.f32 0.0, %v659
          %v661 = vpop.f32.mrb[0].mxu0
          %v662 = vpop.f32.mrb[0].mxu0
          %v663 = vadd.f32 0.0, %v662
          %v664 = vpop.f32.mrb[0].mxu0
          %665 = vmatprep.mubr.bf16.mxu0 0
          %666 = vmatmul.mubr.bf16.gmra.mrb[0].mxu0 %v547
          %v667 = vpop.f32.mrb[0].mxu0
          %v668 = vadd.f32 0.0, %v667
          %v669 = vpop.f32.mrb[0].mxu0
          %v670 = vpop.f32.mrb[0].mxu0
          %v671 = vadd.f32 0.0, %v670
          %v672 = vpop.f32.mrb[0].mxu0
          %673 = vmatprep.mubr.bf16.mxu0 0
          %674 = vmatmul.mubr.bf16.gmra.mrb[0].mxu0 %v548
          %v675 = vpop.f32.mrb[0].mxu0
          %v676 = vadd.f32 0.0, %v675
          %v677 = vpop.f32.mrb[0].mxu0
          %v678 = vpop.f32.mrb[0].mxu0
          %v679 = vadd.f32 0.0, %v678
          %v680 = vpop.f32.mrb[0].mxu0
          %681 = vmatprep.mubr.bf16.mxu0 0
          %682 = vmatmul.mubr.bf16.gmra.mrb[0].mxu0 %v549
          %v683 = vpop.f32.mrb[0].mxu0
          %v684 = vadd.f32 0.0, %v683
          %v685 = vpop.f32.mrb[0].mxu0
          %v686 = vpop.f32.mrb[0].mxu0
          %v687 = vadd.f32 0.0, %v686
          %v688 = vpop.f32.mrb[0].mxu0
          %689 = vmatprep.mubr.bf16.mxu0 0
          %690 = vmatmul.mubr.bf16.gmra.mrb[0].mxu0 %v550
          %v691 = vpop.f32.mrb[0].mxu0
          %v692 = vadd.f32 0.0, %v691
          %v693 = vpop.f32.mrb[0].mxu0
          %v694 = vpop.f32.mrb[0].mxu0
          %v695 = vadd.f32 0.0, %v694
          %v696 = vpop.f32.mrb[0].mxu0
          %697 = vmatprep.mubr.bf16.mxu0 0
          %698 = vmatmul.mubr.bf16.gmra.mrb[0].mxu0 %v551
          %v699 = vpop.f32.mrb[0].mxu0
          %v700 = vadd.f32 0.0, %v699
          %v701 = vpop.f32.mrb[0].mxu0
          %v702 = vpop.f32.mrb[0].mxu0
          %v703 = vadd.f32 0.0, %v702
          %v704 = vpop.f32.mrb[0].mxu0
          %705 = vmatprep.mubr.bf16.mxu0 0
          %706 = vmatmul.mubr.bf16.gmra.mrb[0].mxu0 %v552
          %v707 = vpop.f32.mrb[0].mxu0
          %v708 = vadd.f32 0.0, %v707
          %v709 = vpop.f32.mrb[0].mxu0
          %v710 = vpop.f32.mrb[0].mxu0
          %v711 = vadd.f32 0.0, %v710
          %v712 = vpop.f32.mrb[0].mxu0
          %713 = vdwg.mxu0
          %v714 = vpack.c.bf16 %v655, %v652
          %v715 = vpack.c.bf16 %v663, %v660
          %v716 = vpack.c.bf16 %v671, %v668
          %v717 = vpack.c.bf16 %v679, %v676
          %v718 = vpack.c.bf16 %v687, %v684
          %v719 = vpack.c.bf16 %v695, %v692
          %v720 = vpack.c.bf16 %v703, %v700
          %v721 = vpack.c.bf16 %v711, %v708
          %722 = vst [vmem:[#allocation2] sm:$0xff] %v714
          %723 = vst [vmem:[#allocation2 + $0x8] sm:$0xff] %v715
          %724 = vst [vmem:[#allocation2 + $0x10] sm:$0xff] %v716
          %725 = vst [vmem:[#allocation2 + $0x18] sm:$0xff] %v717
          %726 = vst [vmem:[#allocation2 + $0x20] sm:$0xff] %v718
          %727 = vst [vmem:[#allocation2 + $0x28] sm:$0xff] %v719
          %728 = vst [vmem:[#allocation2 + $0x30] sm:$0xff] %v720
          %729 = vst [vmem:[#allocation2 + $0x38] sm:$0xff] %v721
        $region56: #{tpu_custom_call.1} parent=35 // pred_fallthru
          _
        %s730 = smul.u32 %s33, 128
        %v731 = vld [vmem:[#allocation7] sm:$0xf]
        %v732 = vld [vmem:[#allocation7 + $0x4] sm:$0xf]
        %v733 = vld [vmem:[#allocation7 + $0x8] sm:$0xf]
        %v734 = vld [vmem:[#allocation7 + $0xc] sm:$0xf]
        %v735 = vld [vmem:[#allocation7 + $0x10] sm:$0xf]
        %v736 = vld [vmem:[#allocation7 + $0x14] sm:$0xf]
        %v737 = vld [vmem:[#allocation7 + $0x18] sm:$0xf]
        %v738 = vld [vmem:[#allocation7 + $0x1c] sm:$0xf]
        %v739 = vld [vmem:[#allocation7 + $0x20] sm:$0xf]
        %v740 = vld [vmem:[#allocation7 + $0x24] sm:$0xf]
        %v741 = vld [vmem:[#allocation7 + $0x28] sm:$0xf]
        %v742 = vld [vmem:[#allocation7 + $0x2c] sm:$0xf]
        %v743 = vld [vmem:[#allocation7 + $0x30] sm:$0xf]
        %v744 = vld [vmem:[#allocation7 + $0x34] sm:$0xf]
        %v745 = vld [vmem:[#allocation7 + $0x38] sm:$0xf]
        %v746 = vld [vmem:[#allocation7 + $0x3c] sm:$0xf]
        %v747 = vld [vmem:[#allocation2] sm:$0xff]
        %v748 = vld [vmem:[#allocation2 + $0x8] sm:$0xff]
        %v749 = vld [vmem:[#allocation2 + $0x10] sm:$0xff]
        %v750 = vld [vmem:[#allocation2 + $0x18] sm:$0xff]
        %v751 = vld [vmem:[#allocation2 + $0x20] sm:$0xff]
        %v752 = vld [vmem:[#allocation2 + $0x28] sm:$0xff]
        %v753 = vld [vmem:[#allocation2 + $0x30] sm:$0xff]
        %v754 = vld [vmem:[#allocation2 + $0x38] sm:$0xff]
        %v755 = vld [vmem:[%s275] sm:$0x1]
        %v757 = vlaneseq
        %v758 = vshrl.u32 %v757, 7
        %v759 = vsub.s32 0, %v758
        %v760 = vrot.slane %v755, %v759
        %v778 = vunpack.c.l.b16 %v731
        %v779 = vunpack.c.l.b16 %v732
        %v780 = vunpack.c.l.b16 %v733
        %v781 = vunpack.c.l.b16 %v734
        %v782 = vunpack.c.l.b16 %v735
        %v783 = vunpack.c.l.b16 %v736
        %v784 = vunpack.c.l.b16 %v737
        %v785 = vunpack.c.l.b16 %v738
        %v786 = vunpack.c.l.b16 %v739
        %v787 = vunpack.c.l.b16 %v740
        %v788 = vunpack.c.l.b16 %v741
        %v789 = vunpack.c.l.b16 %v742
        %v790 = vunpack.c.l.b16 %v743
        %v791 = vunpack.c.l.b16 %v744
        %v792 = vunpack.c.l.b16 %v745
        %v793 = vunpack.c.l.b16 %v746
        %v794 = vpack.c.b16 %v779, %v778
        %v795 = vpack.c.b16 %v781, %v780
        %v796 = vpack.c.b16 %v783, %v782
        %v797 = vpack.c.b16 %v785, %v784
        %v798 = vpack.c.b16 %v787, %v786
        %v799 = vpack.c.b16 %v789, %v788
        %v800 = vpack.c.b16 %v791, %v790
        %v801 = vpack.c.b16 %v793, %v792
        %810 = vmatprep.subr.bf16.mxu0 0
        %811 = vmatpush1.bf16.msra.mxu0 %v747
        %812 = vmatprep.subr.bf16.mxu0 0
        %813 = vmatpush1.bf16.msra.mxu0 %v748
        %814 = vmatprep.subr.bf16.mxu0 0
        %815 = vmatpush1.bf16.msra.mxu0 %v749
        %816 = vmatprep.subr.bf16.mxu0 0
        %817 = vmatpush1.bf16.msra.mxu0 %v750
        %818 = vmatprep.subr.bf16.mxu0 0
        %819 = vmatpush1.bf16.msra.mxu0 %v751
        %820 = vmatprep.subr.bf16.mxu0 0
        %821 = vmatpush1.bf16.msra.mxu0 %v752
        %822 = vmatprep.subr.bf16.mxu0 0
        %823 = vmatpush1.bf16.msra.mxu0 %v753
        %824 = vmatprep.subr.bf16.mxu0 0
        %825 = vmatpush1.bf16.msra.mxu0 %v754
        %826 = vmatprep.subr.bf16.mxu0 0
        %827 = vmatpush1.bf16.msra.mxu0 0
        %828 = vmatprep.subr.bf16.mxu0 0
        %829 = vmatpush1.bf16.msra.mxu0 0
        %830 = vmatprep.subr.bf16.mxu0 0
        %831 = vmatpush1.bf16.msra.mxu0 0
        %832 = vmatprep.subr.bf16.mxu0 0
        %833 = vmatpush1.bf16.msra.mxu0 0
        %834 = vmatprep.subr.bf16.mxu0 0
        %835 = vmatpush1.bf16.msra.mxu0 0
        %836 = vmatprep.subr.bf16.mxu0 0
        %837 = vmatpush1.bf16.msra.mxu0 0
        %838 = vmatprep.subr.bf16.mxu0 0
        %839 = vmatpush1.bf16.msra.mxu0 0
        %840 = vmatprep.subr.bf16.mxu0 0
        %841 = vmatpush1.bf16.msra.mxu0 0
        %842 = vmatprep.mubr.bf16.mxu0 0
        %843 = vmatmul.mubr.bf16.gmra.mrb[0].mxu0 %v794
        %v844 = vpop.f32.mrb[0].mxu0
        %v845 = vadd.f32 %v760, %v844
        %v846 = vpop.f32.mrb[0].mxu0
        %v847 = vpop.f32.mrb[0].mxu0
        %v848 = vadd.f32 %v760, %v847
        %v849 = vpop.f32.mrb[0].mxu0
        %850 = vmatprep.mubr.bf16.mxu0 0
        %851 = vmatmul.mubr.bf16.gmra.mrb[0].mxu0 %v795
        %v852 = vpop.f32.mrb[0].mxu0
        %v853 = vadd.f32 %v760, %v852
        %v854 = vpop.f32.mrb[0].mxu0
        %v855 = vpop.f32.mrb[0].mxu0
        %v856 = vadd.f32 %v760, %v855
        %v857 = vpop.f32.mrb[0].mxu0
        %858 = vmatprep.mubr.bf16.mxu0 0
        %859 = vmatmul.mubr.bf16.gmra.mrb[0].mxu0 %v796
        %v860 = vpop.f32.mrb[0].mxu0
        %v861 = vadd.f32 %v760, %v860
        %v862 = vpop.f32.mrb[0].mxu0
        %v863 = vpop.f32.mrb[0].mxu0
        %v864 = vadd.f32 %v760, %v863
        %v865 = vpop.f32.mrb[0].mxu0
        %866 = vmatprep.mubr.bf16.mxu0 0
        %867 = vmatmul.mubr.bf16.gmra.mrb[0].mxu0 %v797
        %v868 = vpop.f32.mrb[0].mxu0
        %v869 = vadd.f32 %v760, %v868
        %v870 = vpop.f32.mrb[0].mxu0
        %v871 = vpop.f32.mrb[0].mxu0
        %v872 = vadd.f32 %v760, %v871
        %v873 = vpop.f32.mrb[0].mxu0
        %874 = vmatprep.mubr.bf16.mxu0 0
        %875 = vmatmul.mubr.bf16.gmra.mrb[0].mxu0 %v798
        %v876 = vpop.f32.mrb[0].mxu0
        %v877 = vadd.f32 %v760, %v876
        %v878 = vpop.f32.mrb[0].mxu0
        %v879 = vpop.f32.mrb[0].mxu0
        %v880 = vadd.f32 %v760, %v879
        %v881 = vpop.f32.mrb[0].mxu0
        %882 = vmatprep.mubr.bf16.mxu0 0
        %883 = vmatmul.mubr.bf16.gmra.mrb[0].mxu0 %v799
        %v884 = vpop.f32.mrb[0].mxu0
        %v885 = vadd.f32 %v760, %v884
        %v886 = vpop.f32.mrb[0].mxu0
        %v887 = vpop.f32.mrb[0].mxu0
        %v888 = vadd.f32 %v760, %v887
        %v889 = vpop.f32.mrb[0].mxu0
        %890 = vmatprep.mubr.bf16.mxu0 0
        %891 = vmatmul.mubr.bf16.gmra.mrb[0].mxu0 %v800
        %v892 = vpop.f32.mrb[0].mxu0
        %v893 = vadd.f32 %v760, %v892
        %v894 = vpop.f32.mrb[0].mxu0
        %v895 = vpop.f32.mrb[0].mxu0
        %v896 = vadd.f32 %v760, %v895
        %v897 = vpop.f32.mrb[0].mxu0
        %898 = vmatprep.mubr.bf16.mxu0 0
        %899 = vmatmul.mubr.bf16.gmra.mrb[0].mxu0 %v801
        %v900 = vpop.f32.mrb[0].mxu0
        %v901 = vadd.f32 %v760, %v900
        %v902 = vpop.f32.mrb[0].mxu0
        %v903 = vpop.f32.mrb[0].mxu0
        %v904 = vadd.f32 %v760, %v903
        %v905 = vpop.f32.mrb[0].mxu0
        %906 = vdwg.mxu0
        %s907 = scalar_lea.vmem [#allocation3], %s730
        %908 = vst [vmem:[%s907] sm:$0xff] %v845
        %909 = vst [vmem:[%s907 + $0x8] sm:$0xff] %v848
        %910 = vst [vmem:[%s907 + $0x10] sm:$0xff] %v853
        %911 = vst [vmem:[%s907 + $0x18] sm:$0xff] %v856
        %912 = vst [vmem:[%s907 + $0x20] sm:$0xff] %v861
        %913 = vst [vmem:[%s907 + $0x28] sm:$0xff] %v864
        %914 = vst [vmem:[%s907 + $0x30] sm:$0xff] %v869
        %915 = vst [vmem:[%s907 + $0x38] sm:$0xff] %v872
        %916 = vst [vmem:[%s907 + $0x40] sm:$0xff] %v877
        %917 = vst [vmem:[%s907 + $0x48] sm:$0xff] %v880
        %918 = vst [vmem:[%s907 + $0x50] sm:$0xff] %v885
        %919 = vst [vmem:[%s907 + $0x58] sm:$0xff] %v888
        %920 = vst [vmem:[%s907 + $0x60] sm:$0xff] %v893
        %921 = vst [vmem:[%s907 + $0x68] sm:$0xff] %v896
        %922 = vst [vmem:[%s907 + $0x70] sm:$0xff] %v901
        %923 = vst [vmem:[%s907 + $0x78] sm:$0xff] %v904
        %p924 = scmp.eq.s32.totalorder %s32, 2
        %p925 = pnand %p924, %p277
        %p926 = pneg %p925
        // Predicated region
        $region57: #{tpu_custom_call.1} parent=35 // pred_check
          _
        $region58: #{tpu_custom_call.1} parent=35 // pred_check_branch
          %928 = sbr.rel (%p925) target = $region60
        $region59: #{tpu_custom_call.1} parent=35 // pred_region
          loop: start=0, step=1, limit=24
          $region61: #{tpu_custom_call.1} parent=59 // loop_pre_header
            _
          $region62: #{tpu_custom_call.1} parent=59 // loop_header
            %s930 = sphi 0, %s934
            %p931 = scmp.ge.s32.totalorder %s930, 24
          $region63: #{tpu_custom_call.1} parent=59 // loop_header_branch
            %933 = sbr.rel (%p931) target = $region67
          $region64: #{tpu_custom_call.1} parent=59 // loop_body
            %s935 = sld [smem:[#allocation5 + %s930]]
            %s936 = sld [smem:[#allocation6 + %s930]]
            %s937 = scalar_lea.vmem [#allocation3], %s935
            %v938 = vld [vmem:[%s937] sm:$0x1]
            %s939 = scalar_lea.vmem [#allocation3], %s936
            %v940 = vld [vmem:[%s939] sm:$0x1]
            %v941 = vmul.f32 %v938, %v940
            %vm942 = vcmask 1040384
            %v943 = vsel %vm942, %v941, 0.0
            %944 = vadd.xlane.f32.xlu0 %v943
            %v945 = vpop.xlane.xlu0 %944
            %v946 = vrot.slane %v945, 4
            %v947 = vadd.f32 %v945, %v946
            %v948 = vrot.slane %v947, 2
            %v949 = vadd.f32 %v947, %v948
            %v950 = vrot.slane %v949, 1
            %v951 = vadd.f32 %v949, %v950
            %s952 = vtos %v951
            %s953 = scalar_lea.smem [#allocation13], %s930
            %954 = sst [smem:[%s953]] %s952
          $region65: #{tpu_custom_call.1} parent=59 // loop_footer
            %s934 = sadd.s32 1, %s930
          $region66: #{tpu_custom_call.1} parent=59 // loop_footer_branch
            %929 = sbr.rel target = $region62
          $region67: #{tpu_custom_call.1} parent=59 // loop_exit
            _
        $region60: #{tpu_custom_call.1} parent=35 // pred_fallthru
          _
        // Predicated region
        $region68: #{tpu_custom_call.1} parent=35 // pred_check
          %p955 = pneg %p152
        $region69: #{tpu_custom_call.1} parent=35 // pred_check_branch
          %957 = sbr.rel (%p955) target = $region71
        $region70: #{tpu_custom_call.1} parent=35 // pred_region
          %s959 = ssub.s32 16, 16
          %960 = vsyncadd [#allocation9], %s959
          %963 = dma.smem_to_hbm [#allocation13], 16, %s6, [#allocation9]
        $region71: #{tpu_custom_call.1} parent=35 // pred_fallthru
          _
        // Predicated region
        $region72: #{tpu_custom_call.1} parent=35 // pred_check
          %p964 = pneg %p152
        $region73: #{tpu_custom_call.1} parent=35 // pred_check_branch
          %966 = sbr.rel (%p964) target = $region75
        $region74: #{tpu_custom_call.1} parent=35 // pred_region
          %967 = dma.done [#allocation9], 16
        $region75: #{tpu_custom_call.1} parent=35 // pred_fallthru
          _
        %968 = sfence
      $region36: #{tpu_custom_call.1} parent=5 // pred_fallthru
        _
      %p969 = scmp.le.s32.totalorder 2, %s23
      // Predicated region
      $region76: #{tpu_custom_call.1} parent=5 // pred_check
        %p970 = pneg %p969
      $region77: #{tpu_custom_call.1} parent=5 // pred_check_branch
        %972 = sbr.rel (%p970) target = $region79
      $region78: #{tpu_custom_call.1} parent=5 // pred_region
        %s973 = ssub.s32 %s23, 2
      $region79: #{tpu_custom_call.1} parent=5 // pred_fallthru
        _
    $region6: #{tpu_custom_call.1} parent=1 // loop_footer
      %s27 = sadd.s32 1, %s23
    $region7: #{tpu_custom_call.1} parent=1 // loop_footer_branch
      %22 = sbr.rel target = $region3
    $region8: #{tpu_custom_call.1} parent=1 // loop_exit
      _
    %974 = vsyncpa [#allocation8], 1
    %s975 = scalar_lea.sflag [#allocation8], 1
    %976 = vsyncpa %s975, 1
    %977 = vsyncpa [#allocation11], 1
    %978 = vsyncpa [#allocation9], 1
    %s979 = scalar_lea.sflag [#allocation9], 1
    %980 = vsyncpa %s979, 1

</llo_original>
